<compile_context>
chip_gen: v7x
topology: tpu7x:2x2x1
jax: 0.10.0
libtpu: 0.0.40
codegen_flags: <defaults>
</compile_context>

<pallas_src>
import jax
import jax.numpy as jnp
from jax import lax
from jax.experimental import pallas as pl
from jax.experimental.pallas import tpu as pltpu


def attn_pool_kernel(x_ref, w1_ref, w2_ref, out_ref):
    # x_ref:   (BT, T, D)  tile of batch rows
    # w1_ref:  (D, D)      linear1.weight, PyTorch layout [out_features, in_features]
    # w2_ref:  (1, D)      linear2.weight, lane-dense row
    # out_ref: (BT, D)
    bt, t, d = x_ref.shape
    x3 = x_ref[...]                                   # (BT, T, D), native dtype
    x2 = x3.reshape(bt * t, d)                        # merge leading dims -> big M

    # h = tanh(x @ W1.T): contract feature dims (W1 untransposed), native-dtype
    # MXU inputs, f32 accumulation.
    h = jnp.tanh(
        lax.dot_general(
            x2,
            w1_ref[...],
            dimension_numbers=(((1,), (1,)), ((), ())),
            preferred_element_type=jnp.float32,
        )
    )                                                 # (BT*T, D), f32
    h3 = h.reshape(bt, t, d)

    # s = tanh(y) @ W2.T as a VPU multiply + XLU lane reduce (avoid N=1 MXU matmul).
    w2_row = w2_ref[...].astype(jnp.float32)          # (1, D)
    s = jnp.sum(h3 * w2_row, axis=-1, keepdims=True)  # (BT, T, 1), f32

    # Softmax over T with the 1/T mean folded into the denominator (exact f32 math).
    m = jnp.max(s, axis=1, keepdims=True)             # (BT, 1, 1)
    e = jnp.exp(s - m)                                # (BT, T, 1)
    denom = jnp.sum(e, axis=1, keepdims=True)         # (BT, 1, 1)
    beta = e / (jnp.float32(t) * denom)               # (BT, T, 1): softmax(s)/T

    pooled = jnp.sum(beta * x3, axis=1)               # (BT, D), f32 accumulation
    out_ref[...] = pooled.astype(out_ref.dtype)


def _pick_bt_tile(B, T, D, itemsize, vmem_budget_bytes=8 << 20):
    """Largest multiple-of-8 divisor of B whose double-buffered x block fits the
    VMEM budget; falls back to the smallest valid tile, then to full B."""
    candidates = [c for c in range(8, B + 1, 8) if B % c == 0]
    if not candidates:
        return B  # full batch dim is always a legal block shape
    fitting = [c for c in candidates if 2 * c * T * D * itemsize <= vmem_budget_bytes]
    return max(fitting) if fitting else min(candidates)


def my_attention_pooling(x, w1, w2, *, bt_tile=None):
    """x: [B, T, D]; w1: [D, D] (linear1.weight); w2: [1, D] (linear2.weight)."""
    B, T, D = x.shape
    if bt_tile is None:
        bt_tile = _pick_bt_tile(B, T, D, x.dtype.itemsize)
    # Batch tile must divide B and satisfy the (8, 128) rule on the (BT, D)
    # output block (multiple of 8, or the full batch dim).
    if bt_tile > B or B % bt_tile != 0 or (bt_tile % 8 != 0 and bt_tile != B):
        bt_tile = B
    grid = (B // bt_tile,)

    return pl.pallas_call(
        attn_pool_kernel,
        out_shape=jax.ShapeDtypeStruct((B, D), x.dtype),
        grid_spec=pltpu.PrefetchScalarGridSpec(
            num_scalar_prefetch=0,
            grid=grid,
            in_specs=[
                pl.BlockSpec((bt_tile, T, D), lambda b: (b, 0, 0)),
                pl.BlockSpec((D, D), lambda b: (0, 0)),   # weight: constant across grid
                pl.BlockSpec((1, D), lambda b: (0, 0)),   # weight: constant across grid
            ],
            out_specs=pl.BlockSpec((bt_tile, D), lambda b: (b, 0)),
        ),
        compiler_params=pltpu.CompilerParams(
            dimension_semantics=("parallel",),
        ),
    )(x, w1, w2)


def _reference(x, w1, w2):
    # Pure-JAX reference mirroring the PyTorch forward exactly.
    y = x @ w1.T                                   # [B, T, D]
    s = jnp.tanh(y) @ w2.T                         # [B, T, 1]
    beta = jax.nn.softmax(s, axis=1)               # softmax over T
    weighted = beta * x                            # [B, T, D]
    return jnp.mean(weighted, axis=1)              # [B, D]


if __name__ == "__main__":
    key = jax.random.PRNGKey(0)
    T, D = 8, 32
    kx, kw1, kw2 = jax.random.split(key, 3)

    # Deterministic parameter init (shapes from nn.Linear(dims, dims) / nn.Linear(dims, 1))
    bound = 1.0 / (D ** 0.5)
    w1 = jax.random.uniform(kw1, (D, D), minval=-bound, maxval=bound, dtype=jnp.float32)
    w2 = jax.random.uniform(kw2, (1, D), minval=-bound, maxval=bound, dtype=jnp.float32)

    # Main case: enough batch rows to exercise the batched grid (2 steps of 8 rows).
    B = 16
    x = jax.random.normal(kx, (B, T, D), dtype=jnp.float32)
    out = my_attention_pooling(x, w1, w2, bt_tile=8)
    jax.block_until_ready(out)
    ref = _reference(x, w1, w2)
    assert out.shape == (B, D)
    assert jnp.allclose(out, ref, atol=1e-5, rtol=1e-5), "mismatch vs reference (B=16)"

    # Auto-tile path (picks the largest fitting multiple-of-8 divisor of B).
    out_auto = my_attention_pooling(x, w1, w2)
    jax.block_until_ready(out_auto)
    assert jnp.allclose(out_auto, ref, atol=1e-5, rtol=1e-5), "mismatch vs reference (auto tile)"

    # Small-batch fallback path (batch tile collapses to the full batch dim).
    x_small = x[:2]
    out_small = my_attention_pooling(x_small, w1, w2)
    jax.block_until_ready(out_small)
    ref_small = _reference(x_small, w1, w2)
    assert jnp.allclose(out_small, ref_small, atol=1e-5, rtol=1e-5), "mismatch vs reference (B=2)"

    print("KERNEL_OK")
</pallas_src>

<mosaic_0001>
module attributes {stable_mosaic.version = 11 : i64} {
  func.func @attn_pool_kernel(%arg0: i32, %arg1: memref<8x8x32xf32, #tpu.memory_space<vmem>>, %arg2: memref<32x32xf32, #tpu.memory_space<vmem>>, %arg3: memref<1x32xf32, #tpu.memory_space<vmem>>, %arg4: memref<8x32xf32, #tpu.memory_space<vmem>>) attributes {dimension_semantics = [#tpu.dimension_semantics<parallel>], iteration_bounds = array<i64: 2>, scalar_prefetch = 0 : i64, scratch_operands = 0 : i64, tpu.core_type = #tpu.core_type<tc>, window_params = [{transform_indices = @transform_0, window_bounds = array<i64: 8, 8, 32>}, {pipeline_mode = #tpu.pipeline_mode<synchronous>, transform_indices = @transform_1, window_bounds = array<i64: 32, 32>}, {pipeline_mode = #tpu.pipeline_mode<synchronous>, transform_indices = @transform_2, window_bounds = array<i64: 1, 32>}, {transform_indices = @transform_3, window_bounds = array<i64: 8, 32>}]} {
    %c0 = arith.constant 0 : index
    %c0_0 = arith.constant 0 : index
    %c0_1 = arith.constant 0 : index
    %0 = vector.load %arg1[%c0, %c0_0, %c0_1] : memref<8x8x32xf32, #tpu.memory_space<vmem>>, vector<8x8x32xf32>
    %1 = vector.shape_cast %0 : vector<8x8x32xf32> to vector<64x32xf32>
    %c0_2 = arith.constant 0 : index
    %c0_3 = arith.constant 0 : index
    %2 = vector.load %arg2[%c0_2, %c0_3] : memref<32x32xf32, #tpu.memory_space<vmem>>, vector<32x32xf32>
    %cst = arith.constant dense<0.000000e+00> : vector<64x32xf32>
    %3 = tpu.matmul %1, %2, %cst {dimension_numbers = #tpu.dot_dimension_numbers<[1], [1], [0], [0], [0, 0, 1, 0], [], []>} : vector<64x32xf32>, vector<32x32xf32>, vector<64x32xf32> -> vector<64x32xf32>
    %4 = math.tanh %3 : vector<64x32xf32>
    %5 = vector.shape_cast %4 : vector<64x32xf32> to vector<8x8x32xf32>
    %c0_4 = arith.constant 0 : index
    %c0_5 = arith.constant 0 : index
    %6 = vector.load %arg3[%c0_4, %c0_5] : memref<1x32xf32, #tpu.memory_space<vmem>>, vector<1x32xf32>
    %7 = vector.shape_cast %6 : vector<1x32xf32> to vector<1x1x32xf32>
    %8 = vector.broadcast %7 : vector<1x1x32xf32> to vector<8x8x32xf32>
    %9 = arith.mulf %5, %8 : vector<8x8x32xf32>
    %cst_6 = arith.constant dense<0.000000e+00> : vector<8x8xf32>
    %10 = vector.multi_reduction <add>, %9, %cst_6 [2] : vector<8x8x32xf32> to vector<8x8xf32>
    %11 = vector.shape_cast %10 : vector<8x8xf32> to vector<8x8x1xf32>
    %cst_7 = arith.constant dense<0xFF800000> : vector<8x1xf32>
    %12 = vector.multi_reduction <maximumf>, %11, %cst_7 [1] : vector<8x8x1xf32> to vector<8x1xf32>
    %13 = vector.shape_cast %12 : vector<8x1xf32> to vector<8x1x1xf32>
    %14 = vector.broadcast %13 : vector<8x1x1xf32> to vector<8x8x1xf32>
    %15 = arith.subf %11, %14 : vector<8x8x1xf32>
    %16 = math.exp %15 : vector<8x8x1xf32>
    %cst_8 = arith.constant dense<0.000000e+00> : vector<8x1xf32>
    %17 = vector.multi_reduction <add>, %16, %cst_8 [1] : vector<8x8x1xf32> to vector<8x1xf32>
    %18 = vector.shape_cast %17 : vector<8x1xf32> to vector<8x1x1xf32>
    %cst_9 = arith.constant 8.000000e+00 : f32
    %19 = vector.broadcast %cst_9 : f32 to vector<8x1x1xf32>
    %20 = arith.mulf %19, %18 : vector<8x1x1xf32>
    %21 = vector.broadcast %20 : vector<8x1x1xf32> to vector<8x8x1xf32>
    %22 = arith.divf %16, %21 : vector<8x8x1xf32>
    %23 = vector.broadcast %22 : vector<8x8x1xf32> to vector<8x8x32xf32>
    %24 = arith.mulf %23, %0 : vector<8x8x32xf32>
    %cst_10 = arith.constant dense<0.000000e+00> : vector<8x32xf32>
    %25 = vector.multi_reduction <add>, %24, %cst_10 [1] : vector<8x8x32xf32> to vector<8x32xf32>
    %c0_11 = arith.constant 0 : index
    %c0_12 = arith.constant 0 : index
    %26 = vector.load %arg4[%c0_11, %c0_12] : memref<8x32xf32, #tpu.memory_space<vmem>>, vector<8x32xf32>
    tpu.vector_store %arg4[%c0_11, %c0_12], %25 {strides = array<i32>} : memref<8x32xf32, #tpu.memory_space<vmem>>, vector<8x32xf32>,
    return
  }
  func.func @transform_0(%arg0: i32) -> (i32, i32, i32) {
    %c0_i32 = arith.constant 0 : i32
    %c0_i32_0 = arith.constant 0 : i32
    %c0_i32_1 = arith.constant 0 : i32
    return %arg0, %c0_i32, %c0_i32_0 : i32, i32, i32
  }
  func.func @transform_1(%arg0: i32) -> (i32, i32) {
    %c0_i32 = arith.constant 0 : i32
    %c0_i32_0 = arith.constant 0 : i32
    %c0_i32_1 = arith.constant 0 : i32
    return %c0_i32, %c0_i32_0 : i32, i32
  }
  func.func @transform_2(%arg0: i32) -> (i32, i32) {
    %c0_i32 = arith.constant 0 : i32
    %c0_i32_0 = arith.constant 0 : i32
    %c0_i32_1 = arith.constant 0 : i32
    return %c0_i32, %c0_i32_0 : i32, i32
  }
  func.func @transform_3(%arg0: i32) -> (i32, i32) {
    %c0_i32 = arith.constant 0 : i32
    %c0_i32_0 = arith.constant 0 : i32
    return %arg0, %c0_i32 : i32, i32
  }
}

</mosaic_0001>

<llo_original>
// kernel: tpu_custom_call.1
$region0: #{tpu_custom_call.1}
  #allocation0 [shape = 'u32[]', space=smem, size = 0x4, offset = 0x4, fixed_abs, tag = 'smem constant byte address 0x4 - core index']
  #allocation1 [shape = 'u32[144,128]{1,0:T(1,128)}', space=vmem, size = 0x12000, scoped, tag = 'internal scratch']
  %s0 = inlined_call_operand.hbm [shape: f32[16,8,32], index: 0, kind: input, shape index: {}]
  %s1 = inlined_call_operand.hbm [shape: f32[32,32], index: 1, kind: input, shape index: {}]
  %s2 = inlined_call_operand.vmem [shape: f32[1,32], index: 2, kind: input, shape index: {}]
  %s3 = inlined_call_operand.hbm [shape: f32[16,32], index: 3, kind: output, shape index: {}]
  %s4 = sld [smem:[#allocation0]]
  $region53: #{tpu_custom_call.1} parent=0
    _
  %s6 = ssub.s32 1, %s4
  %s7 = scalar_select 0, %s6, %s4
  $region1: #{tpu_custom_call.1} parent=0
    #allocation2 [shape = 'u8[65536]{0}', space=vmem, size = 0x10000, scoped, tag = 'input window, operand 0']
    #allocation3 [shape = 's32[2]{0}', space=sflag, size = 0x8, scoped, tag = 'scoped memory for tpu_custom_call.1']
    #allocation4 [shape = 's32[2]{0}', space=sflag, size = 0x8, scoped, tag = 'scoped memory for tpu_custom_call.1']
    #allocation5 [shape = 'u8[16384]{0}', space=vmem, size = 0x4000, scoped, tag = 'input window, operand 1, single buffered']
    #allocation6 [shape = 's32[1]{0}', space=sflag, size = 0x4, scoped, tag = 'scoped memory for tpu_custom_call.1']
    #allocation7 [shape = 'u8[8192]{0}', space=vmem, size = 0x2000, scoped, tag = 'output window, operand 0']
    %8 = vsyncpa [#allocation3], 0
    %s9 = scalar_lea.sflag [#allocation3], 1
    %10 = vsyncpa %s9, 0
    %11 = vsyncpa [#allocation6], 0
    %12 = vsyncpa [#allocation4], 0
    %s13 = scalar_lea.sflag [#allocation4], 1
    %14 = vsyncpa %s13, 0
    loop: start=0, step=1, limit=4
    $region2: #{tpu_custom_call.1} parent=1 // loop_pre_header
      _
    $region3: #{tpu_custom_call.1} parent=1 // loop_header
      %s16 = sphi 0, %s20
      %p17 = scmp.ge.s32.totalorder %s16, 4
      %s26 = sphi 0, %s28
      %s29 = sphi 0, %s26
      %s30 = sphi 0, %s29
      %s46 = sphi 0, %s30
      %s50 = sphi 0, %s50
      %s52 = sphi 0, %s50
      %s53 = sphi 0, %s52
      %s67 = sphi 0, %s53
      %s71 = sphi 0, %s71
      %s73 = sphi 0, %s71
      %s74 = sphi 0, %s73
      %s88 = sphi 0, %s74
      %s94 = sphi 0, %s96
      %s97 = sphi 0, %s94
      %s98 = sphi 0, %s97
      %s114 = sphi 0, %s98
    $region4: #{tpu_custom_call.1} parent=1 // loop_header_branch
      %19 = sbr.rel (%p17) target = $region8
    $region5: #{tpu_custom_call.1} parent=1 // loop_body
      %s21 = ssub.s32 %s16, 1
      %s22 = ssub.s32 %s16, 2
      %s23 = sadd.s32 %s16, 1
      %s24 = ssub.s32 %s16, %s23
      %p25 = scmp.eq.s32.totalorder %s24, 0
      %s27 = sadd.s32 %s26, 1
      %s28 = scalar_select %p25, %s26, %s27
      %p31 = pneg %p25
      %p32 = scmp.eq.s32.totalorder %s16, 1
      %p33 = por %p31, %p32
      %p34 = scmp.ne.s32.totalorder %s26, %s29
      %p35 = scmp.eq.s32.totalorder %s16, 0
      %p36 = por %p34, %p35
      %p37 = scmp.ne.s32.totalorder %s26, %s29
      %p38 = scmp.eq.s32.totalorder %s21, 1
      %p39 = por %p37, %p38
      %p40 = scmp.ne.s32.totalorder %s29, %s30
      %p41 = scmp.eq.s32.totalorder %s21, 0
      %p42 = por %p40, %p41
      %p43 = scmp.ne.s32.totalorder %s29, %s30
      %p44 = scmp.eq.s32.totalorder %s22, 1
      %p45 = por %p43, %p44
      %p47 = scmp.ne.s32.totalorder %s30, %s46
      %p48 = scmp.eq.s32.totalorder %s22, 0
      %p49 = por %p47, %p48
      %s51 = sadd.s32 %s50, 1
      %p54 = scmp.eq.s32.totalorder %s16, 1
      %p55 = scmp.ne.s32.totalorder %s50, %s52
      %p56 = scmp.eq.s32.totalorder %s16, 0
      %p57 = por %p55, %p56
      %p58 = scmp.ne.s32.totalorder %s50, %s52
      %p59 = scmp.eq.s32.totalorder %s21, 1
      %p60 = por %p58, %p59
      %p61 = scmp.ne.s32.totalorder %s52, %s53
      %p62 = scmp.eq.s32.totalorder %s21, 0
      %p63 = por %p61, %p62
      %p64 = scmp.ne.s32.totalorder %s52, %s53
      %p65 = scmp.eq.s32.totalorder %s22, 1
      %p66 = por %p64, %p65
      %p68 = scmp.ne.s32.totalorder %s53, %s67
      %p69 = scmp.eq.s32.totalorder %s22, 0
      %p70 = por %p68, %p69
      %s72 = sadd.s32 %s71, 1
      %p75 = scmp.eq.s32.totalorder %s16, 1
      %p76 = scmp.ne.s32.totalorder %s71, %s73
      %p77 = scmp.eq.s32.totalorder %s16, 0
      %p78 = por %p76, %p77
      %p79 = scmp.ne.s32.totalorder %s71, %s73
      %p80 = scmp.eq.s32.totalorder %s21, 1
      %p81 = por %p79, %p80
      %p82 = scmp.ne.s32.totalorder %s73, %s74
      %p83 = scmp.eq.s32.totalorder %s21, 0
      %p84 = por %p82, %p83
      %p85 = scmp.ne.s32.totalorder %s73, %s74
      %p86 = scmp.eq.s32.totalorder %s22, 1
      %p87 = por %p85, %p86
      %p89 = scmp.ne.s32.totalorder %s74, %s88
      %p90 = scmp.eq.s32.totalorder %s22, 0
      %p91 = por %p89, %p90
      %s92 = ssub.s32 %s16, %s23
      %p93 = scmp.eq.s32.totalorder %s92, 0
      %s95 = sadd.s32 %s94, 1
      %s96 = scalar_select %p93, %s94, %s95
      %p99 = pneg %p93
      %p100 = scmp.eq.s32.totalorder %s16, 1
      %p101 = por %p99, %p100
      %p102 = scmp.ne.s32.totalorder %s94, %s97
      %p103 = scmp.eq.s32.totalorder %s16, 0
      %p104 = por %p102, %p103
      %p105 = scmp.ne.s32.totalorder %s94, %s97
      %p106 = scmp.eq.s32.totalorder %s21, 1
      %p107 = por %p105, %p106
      %p108 = scmp.ne.s32.totalorder %s97, %s98
      %p109 = scmp.eq.s32.totalorder %s21, 0
      %p110 = por %p108, %p109
      %p111 = scmp.ne.s32.totalorder %s97, %s98
      %p112 = scmp.eq.s32.totalorder %s22, 1
      %p113 = por %p111, %p112
      %p115 = scmp.ne.s32.totalorder %s98, %s114
      %p116 = scmp.eq.s32.totalorder %s22, 0
      %p117 = por %p115, %p116
      %p118 = scmp.le.s32.totalorder 1, %s16
      %p119 = scmp.lt.s32.totalorder %s16, 3
      %p120 = pnand %p118, %p119
      %p121 = pneg %p120
      // Predicated region
      $region9: #{tpu_custom_call.1} parent=5 // pred_check
        _
      $region10: #{tpu_custom_call.1} parent=5 // pred_check_branch
        %123 = sbr.rel (%p120) target = $region12
      $region11: #{tpu_custom_call.1} parent=5 // pred_region
        %s124 = ssub.s32 %s16, 1
        // Predicated region
        $region13: #{tpu_custom_call.1} parent=11 // pred_check
          %p125 = pneg %p63
        $region14: #{tpu_custom_call.1} parent=11 // pred_check_branch
          %127 = sbr.rel (%p125) target = $region16
        $region15: #{tpu_custom_call.1} parent=11 // pred_region
          %s129 = ssub.s32 512, 512
          %130 = vsyncadd [#allocation6], %s129
          %s131 = sshll.u32 [#allocation5], 4
          %s132 = int_to_ptr.vmem [resolvable:$true] %s131
          %137 = dma.hbm_to_vmem [thread:$0]  %s1, 512, %s132, [#allocation6], 128, 128, 8
        $region16: #{tpu_custom_call.1} parent=11 // pred_fallthru
          _
        // Predicated region
        $region17: #{tpu_custom_call.1} parent=11 // pred_check
          %p138 = pneg %p84
        $region18: #{tpu_custom_call.1} parent=11 // pred_check_branch
          %140 = sbr.rel (%p138) target = $region20
        $region19: #{tpu_custom_call.1} parent=11 // pred_region
          _
        $region20: #{tpu_custom_call.1} parent=11 // pred_fallthru
          _
      $region12: #{tpu_custom_call.1} parent=5 // pred_fallthru
        _
      %p141 = scmp.lt.s32.totalorder %s16, 2
      // Predicated region
      $region21: #{tpu_custom_call.1} parent=5 // pred_check
        %p142 = pneg %p141
      $region22: #{tpu_custom_call.1} parent=5 // pred_check_branch
        %144 = sbr.rel (%p142) target = $region24
      $region23: #{tpu_custom_call.1} parent=5 // pred_region
        // Predicated region
        $region25: #{tpu_custom_call.1} parent=23 // pred_check
          %p145 = pneg %p36
        $region26: #{tpu_custom_call.1} parent=23 // pred_check_branch
          %147 = sbr.rel (%p145) target = $region28
        $region27: #{tpu_custom_call.1} parent=23 // pred_region
          %s148 = sand.u32 %s26, 1
          %s149 = scalar_lea.sflag [#allocation3], %s148
          %s150 = sand.u32 %s26, 1
          %s151 = smul.addr %s150, 64
          %s152 = scalar_lea.vmem [#allocation2], %s151
          %s153 = smul.u32 8, %s16
          %s155 = ssub.s32 1024, 1024
          %156 = vsyncadd %s149, %s155
          %s157 = smul.addr %s153, 128
          %s158 = scalar_lea.hbm %s0, %s157
          %s159 = sshll.u32 %s152, 4
          %s160 = int_to_ptr.vmem [resolvable:$true] %s159
          %165 = dma.hbm_to_vmem [thread:$0]  %s158, 1024, %s160, %s149, 128, 128, 8
        $region28: #{tpu_custom_call.1} parent=23 // pred_fallthru
          _
      $region24: #{tpu_custom_call.1} parent=5 // pred_fallthru
        _
      %p166 = scmp.le.s32.totalorder 1, %s16
      %p167 = scmp.lt.s32.totalorder %s16, 3
      %p168 = pnand %p166, %p167
      %p169 = pneg %p168
      // Predicated region
      $region29: #{tpu_custom_call.1} parent=5 // pred_check
        _
      $region30: #{tpu_custom_call.1} parent=5 // pred_check_branch
        %171 = sbr.rel (%p168) target = $region32
      $region31: #{tpu_custom_call.1} parent=5 // pred_region
        %s172 = ssub.s32 %s16, 1
        %s173 = sand.u32 %s29, 1
        %s174 = scalar_lea.sflag [#allocation3], %s173
        %s175 = sand.u32 %s29, 1
        %s176 = smul.addr %s175, 64
        %s177 = scalar_lea.vmem [#allocation2], %s176
        // Predicated region
        $region33: #{tpu_custom_call.1} parent=31 // pred_check
          %p178 = pneg %p42
        $region34: #{tpu_custom_call.1} parent=31 // pred_check_branch
          %180 = sbr.rel (%p178) target = $region36
        $region35: #{tpu_custom_call.1} parent=31 // pred_region
          %181 = dma.done %s174, 1024
        $region36: #{tpu_custom_call.1} parent=31 // pred_fallthru
          _
        // Predicated region
        $region37: #{tpu_custom_call.1} parent=31 // pred_check
          %p182 = pneg %p63
        $region38: #{tpu_custom_call.1} parent=31 // pred_check_branch
          %184 = sbr.rel (%p182) target = $region40
        $region39: #{tpu_custom_call.1} parent=31 // pred_region
          %185 = dma.done [#allocation6], 512
        $region40: #{tpu_custom_call.1} parent=31 // pred_fallthru
          _
        %s186 = sand.u32 %s29, 1
        %s187 = scalar_lea.sflag [#allocation3], %s186
        %s188 = sand.u32 %s29, 1
        %s189 = smul.addr %s188, 64
        %s190 = scalar_lea.vmem [#allocation2], %s189
        %p191 = pneg %p42
        %p192 = pneg %p39
        %p193 = pneg %p63
        %p194 = pneg %p60
        %p195 = pneg %p84
        %p196 = pneg %p81
        %p197 = pneg %p110
        %p198 = pneg %p107
        %s199 = sand.u32 %s97, 1
        %s200 = scalar_lea.sflag [#allocation4], %s199
        %s201 = sand.u32 %s97, 1
        %s202 = smul.addr %s201, 8
        %s203 = scalar_lea.vmem [#allocation7], %s202
        %s204 = smul.u32 8, %s21
        %v205 = vld [vmem:[%s177] sm:$0xff]
        %v206 = vld [vmem:[%s177 + $0x8] sm:$0xff]
        %v207 = vld [vmem:[%s177 + $0x10] sm:$0xff]
        %v208 = vld [vmem:[%s177 + $0x18] sm:$0xff]
        %v209 = vld [vmem:[%s177 + $0x20] sm:$0xff]
        %v210 = vld [vmem:[%s177 + $0x28] sm:$0xff]
        %v211 = vld [vmem:[%s177 + $0x30] sm:$0xff]
        %v212 = vld [vmem:[%s177 + $0x38] sm:$0xff]
        %v213 = vld [vmem:[#allocation5] sm:$0xff]
        %v214 = vld [vmem:[#allocation5 + $0x8] sm:$0xff]
        %v215 = vld [vmem:[#allocation5 + $0x10] sm:$0xff]
        %v216 = vld [vmem:[#allocation5 + $0x18] sm:$0xff]
        %vm217 = vcmask 261120
        %v219 = vsel %vm217, %v205, 0
        %v222 = vsel %vm217, %v206, 0
        %v225 = vsel %vm217, %v207, 0
        %v228 = vsel %vm217, %v208, 0
        %v231 = vsel %vm217, %v209, 0
        %v234 = vsel %vm217, %v210, 0
        %v237 = vsel %vm217, %v211, 0
        %v240 = vsel %vm217, %v212, 0
        %v243 = vsel %vm217, %v213, 0
        %v246 = vsel %vm217, %v214, 0
        %v249 = vsel %vm217, %v215, 0
        %v252 = vsel %vm217, %v216, 0
        %254 = vmatprep.subr.mxu0 0.0
        %255 = vmatpush1.xpose.msra.mxu0 %v243
        %256 = vmatprep.subr.mxu0 0.0
        %257 = vmatpush1.xpose.msra.mxu0 %v246
        %258 = vmatprep.subr.mxu0 0.0
        %259 = vmatpush1.xpose.msra.mxu0 %v249
        %260 = vmatprep.subr.mxu0 0.0
        %261 = vmatpush1.xpose.msra.mxu0 %v252
        %262 = vmatprep.subr.mxu0 0.0
        %263 = vmatpush1.xpose.msra.mxu0 0.0
        %264 = vmatprep.subr.mxu0 0.0
        %265 = vmatpush1.xpose.msra.mxu0 0.0
        %266 = vmatprep.subr.mxu0 0.0
        %267 = vmatpush1.xpose.msra.mxu0 0.0
        %268 = vmatprep.subr.mxu0 0.0
        %269 = vmatpush1.xpose.msra.mxu0 0.0
        %270 = vmatprep.subr.mxu0 0.0
        %271 = vmatpush1.xpose.msra.mxu0 0.0
        %272 = vmatprep.subr.mxu0 0.0
        %273 = vmatpush1.xpose.msra.mxu0 0.0
        %274 = vmatprep.subr.mxu0 0.0
        %275 = vmatpush1.xpose.msra.mxu0 0.0
        %276 = vmatprep.subr.mxu0 0.0
        %277 = vmatpush1.xpose.msra.mxu0 0.0
        %278 = vmatprep.subr.mxu0 0.0
        %279 = vmatpush1.xpose.msra.mxu0 0.0
        %280 = vmatprep.subr.mxu0 0.0
        %281 = vmatpush1.xpose.msra.mxu0 0.0
        %282 = vmatprep.subr.mxu0 0.0
        %283 = vmatpush1.xpose.msra.mxu0 0.0
        %284 = vmatprep.subr.mxu0 0.0
        %285 = vmatpush1.xpose.msra.mxu0 0.0
        %286 = vmatprep.subr.mxu0 0.0
        %287 = vmatpush1.xpose.msra.mxu0 0.0
        %288 = vmatprep.subr.mxu0 0.0
        %289 = vmatpush1.xpose.msra.mxu0 0.0
        %290 = vmatprep.subr.mxu0 0.0
        %291 = vmatpush1.xpose.msra.mxu0 0.0
        %292 = vmatprep.subr.mxu0 0.0
        %293 = vmatpush1.xpose.msra.mxu0 0.0
        %294 = vmatprep.subr.mxu0 0.0
        %295 = vmatpush1.xpose.msra.mxu0 0.0
        %296 = vmatprep.subr.mxu0 0.0
        %297 = vmatpush1.xpose.msra.mxu0 0.0
        %298 = vmatprep.subr.mxu0 0.0
        %299 = vmatpush1.xpose.msra.mxu0 0.0
        %300 = vmatprep.subr.mxu0 0.0
        %301 = vmatpush1.xpose.msra.mxu0 0.0
        %302 = vmatprep.subr.mxu0 0.0
        %303 = vmatpush1.xpose.msra.mxu0 0.0
        %304 = vmatprep.subr.mxu0 0.0
        %305 = vmatpush1.xpose.msra.mxu0 0.0
        %306 = vmatprep.subr.mxu0 0.0
        %307 = vmatpush1.xpose.msra.mxu0 0.0
        %308 = vmatprep.subr.mxu0 0.0
        %309 = vmatpush1.xpose.msra.mxu0 0.0
        %310 = vmatprep.subr.mxu0 0.0
        %311 = vmatpush1.xpose.msra.mxu0 0.0
        %312 = vmatprep.subr.mxu0 0.0
        %313 = vmatpush1.xpose.msra.mxu0 0.0
        %314 = vmatprep.subr.mxu0 0.0
        %315 = vmatpush1.xpose.msra.mxu0 0.0
        %316 = vmatprep.subr.mxu0 0.0
        %317 = vmatpush1.xpose.msra.mxu0 0.0
        %318 = vmatprep.mubr.f32.mxu0 0.0
        %319 = vmatmul.mubr.f32.gmra.mrb[0].mxu0 %v219
        %v320 = vpop.f32.mrb[0].mxu0
        %v321 = vadd.f32 0.0, %v320
        %v322 = vpop.f32.mrb[0].mxu0
        %323 = vmatprep.mubr.f32.mxu0 0.0
        %324 = vmatmul.mubr.f32.gmra.mrb[0].mxu0 %v222
        %v325 = vpop.f32.mrb[0].mxu0
        %v326 = vadd.f32 0.0, %v325
        %v327 = vpop.f32.mrb[0].mxu0
        %328 = vmatprep.mubr.f32.mxu0 0.0
        %329 = vmatmul.mubr.f32.gmra.mrb[0].mxu0 %v225
        %v330 = vpop.f32.mrb[0].mxu0
        %v331 = vadd.f32 0.0, %v330
        %v332 = vpop.f32.mrb[0].mxu0
        %333 = vmatprep.mubr.f32.mxu0 0.0
        %334 = vmatmul.mubr.f32.gmra.mrb[0].mxu0 %v228
        %v335 = vpop.f32.mrb[0].mxu0
        %v336 = vadd.f32 0.0, %v335
        %v337 = vpop.f32.mrb[0].mxu0
        %338 = vmatprep.mubr.f32.mxu0 0.0
        %339 = vmatmul.mubr.f32.gmra.mrb[0].mxu0 %v231
        %v340 = vpop.f32.mrb[0].mxu0
        %v341 = vadd.f32 0.0, %v340
        %v342 = vpop.f32.mrb[0].mxu0
        %343 = vmatprep.mubr.f32.mxu0 0.0
        %344 = vmatmul.mubr.f32.gmra.mrb[0].mxu0 %v234
        %v345 = vpop.f32.mrb[0].mxu0
        %v346 = vadd.f32 0.0, %v345
        %v347 = vpop.f32.mrb[0].mxu0
        %348 = vmatprep.mubr.f32.mxu0 0.0
        %349 = vmatmul.mubr.f32.gmra.mrb[0].mxu0 %v237
        %v350 = vpop.f32.mrb[0].mxu0
        %v351 = vadd.f32 0.0, %v350
        %v352 = vpop.f32.mrb[0].mxu0
        %353 = vmatprep.mubr.f32.mxu0 0.0
        %354 = vmatmul.mubr.f32.gmra.mrb[0].mxu0 %v240
        %v355 = vpop.f32.mrb[0].mxu0
        %v356 = vadd.f32 0.0, %v355
        %v357 = vpop.f32.mrb[0].mxu0
        %358 = vdwg.mxu0
        %v359 = vtanh.pop %v321
        %v360 = vtanh.pop %v326
        %v361 = vtanh.pop %v331
        %v362 = vtanh.pop %v336
        %v363 = vtanh.pop %v341
        %v364 = vtanh.pop %v346
        %v365 = vtanh.pop %v351
        %v366 = vtanh.pop %v356
        %v367 = vld [vmem:[%s2] sm:$0x1]
        %v369 = vlaneseq
        %v370 = vshrl.u32 %v369, 7
        %v371 = vsub.s32 0, %v370
        %v372 = vrot.slane %v367, %v371
        %v374 = vmul.f32 %v359, %v372
        %v375 = vmul.f32 %v360, %v372
        %v376 = vmul.f32 %v361, %v372
        %v377 = vmul.f32 %v362, %v372
        %v378 = vmul.f32 %v363, %v372
        %v379 = vmul.f32 %v364, %v372
        %v380 = vmul.f32 %v365, %v372
        %v381 = vmul.f32 %v366, %v372
        %v382 = vsel %vm217, %v374, 0.0
        %383 = vadd.xlane.f32.xlu0 %v382
        %v384 = vpop.xlane.xlu0 %383
        %v385 = vsel %vm217, %v375, 0.0
        %386 = vadd.xlane.f32.xlu0 %v385
        %v387 = vpop.xlane.xlu0 %386
        %v388 = vsel %vm217, %v376, 0.0
        %389 = vadd.xlane.f32.xlu0 %v388
        %v390 = vpop.xlane.xlu0 %389
        %v391 = vsel %vm217, %v377, 0.0
        %392 = vadd.xlane.f32.xlu0 %v391
        %v393 = vpop.xlane.xlu0 %392
        %v394 = vsel %vm217, %v378, 0.0
        %395 = vadd.xlane.f32.xlu0 %v394
        %v396 = vpop.xlane.xlu0 %395
        %v397 = vsel %vm217, %v379, 0.0
        %398 = vadd.xlane.f32.xlu0 %v397
        %v399 = vpop.xlane.xlu0 %398
        %v400 = vsel %vm217, %v380, 0.0
        %401 = vadd.xlane.f32.xlu0 %v400
        %v402 = vpop.xlane.xlu0 %401
        %v403 = vsel %vm217, %v381, 0.0
        %404 = vadd.xlane.f32.xlu0 %v403
        %v405 = vpop.xlane.xlu0 %404
        %v406 = vrot.slane %v384, 4
        %v407 = vmax.f32 %v384, %v406
        %v408 = vrot.slane %v407, 2
        %v409 = vmax.f32 %v407, %v408
        %v410 = vrot.slane %v409, 1
        %v411 = vmax.f32 %v409, %v410
        %v412 = vrot.slane %v387, 4
        %v413 = vmax.f32 %v387, %v412
        %v414 = vrot.slane %v413, 2
        %v415 = vmax.f32 %v413, %v414
        %v416 = vrot.slane %v415, 1
        %v417 = vmax.f32 %v415, %v416
        %v418 = vrot.slane %v390, 4
        %v419 = vmax.f32 %v390, %v418
        %v420 = vrot.slane %v419, 2
        %v421 = vmax.f32 %v419, %v420
        %v422 = vrot.slane %v421, 1
        %v423 = vmax.f32 %v421, %v422
        %v424 = vrot.slane %v393, 4
        %v425 = vmax.f32 %v393, %v424
        %v426 = vrot.slane %v425, 2
        %v427 = vmax.f32 %v425, %v426
        %v428 = vrot.slane %v427, 1
        %v429 = vmax.f32 %v427, %v428
        %v430 = vrot.slane %v396, 4
        %v431 = vmax.f32 %v396, %v430
        %v432 = vrot.slane %v431, 2
        %v433 = vmax.f32 %v431, %v432
        %v434 = vrot.slane %v433, 1
        %v435 = vmax.f32 %v433, %v434
        %v436 = vrot.slane %v399, 4
        %v437 = vmax.f32 %v399, %v436
        %v438 = vrot.slane %v437, 2
        %v439 = vmax.f32 %v437, %v438
        %v440 = vrot.slane %v439, 1
        %v441 = vmax.f32 %v439, %v440
        %v442 = vrot.slane %v402, 4
        %v443 = vmax.f32 %v402, %v442
        %v444 = vrot.slane %v443, 2
        %v445 = vmax.f32 %v443, %v444
        %v446 = vrot.slane %v445, 1
        %v447 = vmax.f32 %v445, %v446
        %v448 = vrot.slane %v405, 4
        %v449 = vmax.f32 %v405, %v448
        %v450 = vrot.slane %v449, 2
        %v451 = vmax.f32 %v449, %v450
        %v452 = vrot.slane %v451, 1
        %v453 = vmax.f32 %v451, %v452
        %v454 = vsub.f32 %v384, %v411
        %v455 = vsub.f32 %v387, %v417
        %v456 = vsub.f32 %v390, %v423
        %v457 = vsub.f32 %v393, %v429
        %v458 = vsub.f32 %v396, %v435
        %v459 = vsub.f32 %v399, %v441
        %v460 = vsub.f32 %v402, %v447
        %v461 = vsub.f32 %v405, %v453
        %v462 = vmul.f32 %v454, 1.442695
        %v463 = vpow.pop %v462
        %v464 = vmul.f32 %v455, 1.442695
        %v465 = vpow.pop %v464
        %v466 = vmul.f32 %v456, 1.442695
        %v467 = vpow.pop %v466
        %v468 = vmul.f32 %v457, 1.442695
        %v469 = vpow.pop %v468
        %v470 = vmul.f32 %v458, 1.442695
        %v471 = vpow.pop %v470
        %v472 = vmul.f32 %v459, 1.442695
        %v473 = vpow.pop %v472
        %v474 = vmul.f32 %v460, 1.442695
        %v475 = vpow.pop %v474
        %v476 = vmul.f32 %v461, 1.442695
        %v477 = vpow.pop %v476
        %v478 = vrot.slane %v463, 4
        %v479 = vadd.f32 %v463, %v478
        %v480 = vrot.slane %v479, 2
        %v481 = vadd.f32 %v479, %v480
        %v482 = vrot.slane %v481, 1
        %v483 = vadd.f32 %v481, %v482
        %v484 = vrot.slane %v465, 4
        %v485 = vadd.f32 %v465, %v484
        %v486 = vrot.slane %v485, 2
        %v487 = vadd.f32 %v485, %v486
        %v488 = vrot.slane %v487, 1
        %v489 = vadd.f32 %v487, %v488
        %v490 = vrot.slane %v467, 4
        %v491 = vadd.f32 %v467, %v490
        %v492 = vrot.slane %v491, 2
        %v493 = vadd.f32 %v491, %v492
        %v494 = vrot.slane %v493, 1
        %v495 = vadd.f32 %v493, %v494
        %v496 = vrot.slane %v469, 4
        %v497 = vadd.f32 %v469, %v496
        %v498 = vrot.slane %v497, 2
        %v499 = vadd.f32 %v497, %v498
        %v500 = vrot.slane %v499, 1
        %v501 = vadd.f32 %v499, %v500
        %v502 = vrot.slane %v471, 4
        %v503 = vadd.f32 %v471, %v502
        %v504 = vrot.slane %v503, 2
        %v505 = vadd.f32 %v503, %v504
        %v506 = vrot.slane %v505, 1
        %v507 = vadd.f32 %v505, %v506
        %v508 = vrot.slane %v473, 4
        %v509 = vadd.f32 %v473, %v508
        %v510 = vrot.slane %v509, 2
        %v511 = vadd.f32 %v509, %v510
        %v512 = vrot.slane %v511, 1
        %v513 = vadd.f32 %v511, %v512
        %v514 = vrot.slane %v475, 4
        %v515 = vadd.f32 %v475, %v514
        %v516 = vrot.slane %v515, 2
        %v517 = vadd.f32 %v515, %v516
        %v518 = vrot.slane %v517, 1
        %v519 = vadd.f32 %v517, %v518
        %v520 = vrot.slane %v477, 4
        %v521 = vadd.f32 %v477, %v520
        %v522 = vrot.slane %v521, 2
        %v523 = vadd.f32 %v521, %v522
        %v524 = vrot.slane %v523, 1
        %v525 = vadd.f32 %v523, %v524
        %v526 = vmul.f32 %v483, 8.0
        %v527 = vmul.f32 %v489, 8.0
        %v528 = vmul.f32 %v495, 8.0
        %v529 = vmul.f32 %v501, 8.0
        %v530 = vmul.f32 %v507, 8.0
        %v531 = vmul.f32 %v513, 8.0
        %v532 = vmul.f32 %v519, 8.0
        %v533 = vmul.f32 %v525, 8.0
        %v534 = vrcp.pop %v526
        %v535 = vmul.f32 %v463, %v534
        %v536 = vrcp.pop %v527
        %v537 = vmul.f32 %v465, %v536
        %v538 = vrcp.pop %v528
        %v539 = vmul.f32 %v467, %v538
        %v540 = vrcp.pop %v529
        %v541 = vmul.f32 %v469, %v540
        %v542 = vrcp.pop %v530
        %v543 = vmul.f32 %v471, %v542
        %v544 = vrcp.pop %v531
        %v545 = vmul.f32 %v473, %v544
        %v546 = vrcp.pop %v532
        %v547 = vmul.f32 %v475, %v546
        %v548 = vrcp.pop %v533
        %v549 = vmul.f32 %v477, %v548
        %v550 = vmul.f32 %v535, %v205
        %v551 = vmul.f32 %v537, %v206
        %v552 = vmul.f32 %v539, %v207
        %v553 = vmul.f32 %v541, %v208
        %v554 = vmul.f32 %v543, %v209
        %v555 = vmul.f32 %v545, %v210
        %v556 = vmul.f32 %v547, %v211
        %v557 = vmul.f32 %v549, %v212
        %v558 = vsel %vm217, %v550, 0.0
        %v559 = vrot.slane %v558, 4
        %v560 = vadd.f32 %v558, %v559
        %v561 = vrot.slane %v560, 2
        %v562 = vadd.f32 %v560, %v561
        %v563 = vrot.slane %v562, 1
        %v564 = vadd.f32 %v562, %v563
        %v565 = vsel %vm217, %v551, 0.0
        %v566 = vrot.slane %v565, 4
        %v567 = vadd.f32 %v565, %v566
        %v568 = vrot.slane %v567, 2
        %v569 = vadd.f32 %v567, %v568
        %v570 = vrot.slane %v569, 1
        %v571 = vadd.f32 %v569, %v570
        %v572 = vsel %vm217, %v552, 0.0
        %v573 = vrot.slane %v572, 4
        %v574 = vadd.f32 %v572, %v573
        %v575 = vrot.slane %v574, 2
        %v576 = vadd.f32 %v574, %v575
        %v577 = vrot.slane %v576, 1
        %v578 = vadd.f32 %v576, %v577
        %v579 = vsel %vm217, %v553, 0.0
        %v580 = vrot.slane %v579, 4
        %v581 = vadd.f32 %v579, %v580
        %v582 = vrot.slane %v581, 2
        %v583 = vadd.f32 %v581, %v582
        %v584 = vrot.slane %v583, 1
        %v585 = vadd.f32 %v583, %v584
        %v586 = vsel %vm217, %v554, 0.0
        %v587 = vrot.slane %v586, 4
        %v588 = vadd.f32 %v586, %v587
        %v589 = vrot.slane %v588, 2
        %v590 = vadd.f32 %v588, %v589
        %v591 = vrot.slane %v590, 1
        %v592 = vadd.f32 %v590, %v591
        %v593 = vsel %vm217, %v555, 0.0
        %v594 = vrot.slane %v593, 4
        %v595 = vadd.f32 %v593, %v594
        %v596 = vrot.slane %v595, 2
        %v597 = vadd.f32 %v595, %v596
        %v598 = vrot.slane %v597, 1
        %v599 = vadd.f32 %v597, %v598
        %v600 = vsel %vm217, %v556, 0.0
        %v601 = vrot.slane %v600, 4
        %v602 = vadd.f32 %v600, %v601
        %v603 = vrot.slane %v602, 2
        %v604 = vadd.f32 %v602, %v603
        %v605 = vrot.slane %v604, 1
        %v606 = vadd.f32 %v604, %v605
        %v607 = vsel %vm217, %v557, 0.0
        %v608 = vrot.slane %v607, 4
        %v609 = vadd.f32 %v607, %v608
        %v610 = vrot.slane %v609, 2
        %v611 = vadd.f32 %v609, %v610
        %v612 = vrot.slane %v611, 1
        %v613 = vadd.f32 %v611, %v612
        %vm622 = vcmask 1041409
        %v623 = vsel %vm622, %v571, %v564
        %vm624 = vcmask 1042434
        %v625 = vsel %vm624, %v578, %v623
        %vm626 = vcmask 1043459
        %v627 = vsel %vm626, %v585, %v625
        %vm628 = vcmask 1044484
        %v629 = vsel %vm628, %v592, %v627
        %vm630 = vcmask 1045509
        %v631 = vsel %vm630, %v599, %v629
        %vm632 = vcmask 1046534
        %v633 = vsel %vm632, %v606, %v631
        %vm634 = vcmask 1047559
        %v635 = vsel %vm634, %v613, %v633
        %637 = vst.msk [vmem:[%s203] sm:$0xff] %vm217, %v635
        %s638 = sand.u32 %s97, 1
        %s639 = scalar_lea.sflag [#allocation4], %s638
        %s640 = sand.u32 %s97, 1
        %s641 = smul.addr %s640, 8
        %s642 = scalar_lea.vmem [#allocation7], %s641
        // Predicated region
        $region41: #{tpu_custom_call.1} parent=31 // pred_check
          %p643 = pneg %p107
        $region42: #{tpu_custom_call.1} parent=31 // pred_check_branch
          %645 = sbr.rel (%p643) target = $region44
        $region43: #{tpu_custom_call.1} parent=31 // pred_region
          %s647 = ssub.s32 128, 128
          %648 = vsyncadd %s639, %s647
          %s649 = smul.addr %s21, 128
          %s650 = scalar_lea.hbm %s3, %s649
          %s652 = sshll.u32 %s642, 4
          %s653 = int_to_ptr.vmem [resolvable:$true] %s652
          %655 = dma.vmem_to_hbm [thread:$0]  %s653, 128, %s650, %s639
        $region44: #{tpu_custom_call.1} parent=31 // pred_fallthru
          _
      $region32: #{tpu_custom_call.1} parent=5 // pred_fallthru
        _
      %p656 = scmp.le.s32.totalorder 2, %s16
      // Predicated region
      $region45: #{tpu_custom_call.1} parent=5 // pred_check
        %p657 = pneg %p656
      $region46: #{tpu_custom_call.1} parent=5 // pred_check_branch
        %659 = sbr.rel (%p657) target = $region48
      $region47: #{tpu_custom_call.1} parent=5 // pred_region
        %s660 = ssub.s32 %s16, 2
        // Predicated region
        $region49: #{tpu_custom_call.1} parent=47 // pred_check
          %p661 = pneg %p113
        $region50: #{tpu_custom_call.1} parent=47 // pred_check_branch
          %663 = sbr.rel (%p661) target = $region52
        $region51: #{tpu_custom_call.1} parent=47 // pred_region
          %s664 = sand.u32 %s98, 1
          %s665 = scalar_lea.sflag [#allocation4], %s664
          %s666 = sand.u32 %s98, 1
          %s667 = smul.addr %s666, 8
          %s668 = scalar_lea.vmem [#allocation7], %s667
          %669 = dma.done %s665, 128
        $region52: #{tpu_custom_call.1} parent=47 // pred_fallthru
          _
      $region48: #{tpu_custom_call.1} parent=5 // pred_fallthru
        _
    $region6: #{tpu_custom_call.1} parent=1 // loop_footer
      %s20 = sadd.s32 1, %s16
    $region7: #{tpu_custom_call.1} parent=1 // loop_footer_branch
      %15 = sbr.rel target = $region3
    $region8: #{tpu_custom_call.1} parent=1 // loop_exit
      _
    %670 = vsyncpa [#allocation3], 1
    %s671 = scalar_lea.sflag [#allocation3], 1
    %672 = vsyncpa %s671, 1
    %673 = vsyncpa [#allocation6], 1
    %674 = vsyncpa [#allocation4], 1
    %s675 = scalar_lea.sflag [#allocation4], 1
    %676 = vsyncpa %s675, 1

</llo_original>
